<compile_context>
chip_gen: v7x
topology: tpu7x:2x2x1
jax: 0.10.0
libtpu: 0.0.40
codegen_flags: <defaults>
</compile_context>

<pallas_src>
import functools

import jax
import jax.numpy as jnp
from jax.experimental import pallas as pl
from jax.experimental.pallas import tpu as pltpu

_NEG_BIG = -1e30  # finite stand-in for -inf (avoids inf-inf NaN hazards)


def _round_up(v, m):
    return ((v + m - 1) // m) * m


def _accumulate(logits, m_sc, l_sc):
    """Online logsumexp update over the class axis for one (TC, TN) tile."""
    m_cur = jnp.max(logits, axis=0, keepdims=True)                # (1, TN)
    m_new = jnp.maximum(m_sc[...], m_cur)
    alpha = jnp.exp(m_sc[...] - m_new)
    p = jnp.exp(logits - m_new)
    l_sc[...] = alpha * l_sc[...] + jnp.sum(p, axis=0, keepdims=True)
    m_sc[...] = m_new


def _lse_kernel(x_ref, wn_ref, lse_ref, m_sc, l_sc, *, n_classes, block_c):
    """One (batch-tile i, class-tile j) grid step.

    x_ref  : (D, TN)  unit-row features, bf16, batch along lanes
    wn_ref : (TC, D)  unit-column W (transposed) with `scale` folded in, bf16
    lse_ref: (1, TN)  per-example logsumexp of scaled logits (written at last j)
    """
    j = pl.program_id(1)
    nj = pl.num_programs(1)

    @pl.when(j == 0)
    def _init():
        m_sc[...] = jnp.full_like(m_sc, _NEG_BIG)
        l_sc[...] = jnp.zeros_like(l_sc)

    # Scaled-cosine logits for this class tile: (TC, TN); bf16 MXU, f32 acc.
    logits = jnp.dot(wn_ref[...], x_ref[...],
                     preferred_element_type=jnp.float32)

    if n_classes % block_c != 0:
        # Padded class rows exist only in the last class tile; mask only there.
        is_last = j == nj - 1

        @pl.when(is_last)
        def _masked():
            cls = (jax.lax.broadcasted_iota(jnp.int32, logits.shape, 0)
                   + j * block_c)
            _accumulate(jnp.where(cls < n_classes, logits, _NEG_BIG),
                        m_sc, l_sc)

        @pl.when(jnp.logical_not(is_last))
        def _plain():
            _accumulate(logits, m_sc, l_sc)
    else:
        # Compile-time branch: no padded classes -> no iota/mask ever.
        _accumulate(logits, m_sc, l_sc)

    @pl.when(j == nj - 1)
    def _finalize():
        lse_ref[...] = m_sc[...] + jnp.log(l_sc[...])


def ohem_sphere_loss(x, label, W, *, thresh=0.7, scale=14.0,
                     block_n=512, block_c=1024):
    """Exact forward of OhemSphereLoss.

    x:     (N, in_feats) float32
    label: (N,) int32
    W:     (in_feats, n_classes) float32
    Returns scalar float32 loss.
    """
    n, d = x.shape
    d_w, c = W.shape
    assert d_w == d

    # ---- One-time wrapper prep (hoisted out of the kernel) ----------------
    x32 = x.astype(jnp.float32)
    ssq = jnp.sum(x32 * x32, axis=1, keepdims=True)
    # torch clamp(norm, 1e-12)  ==  clamp(norm^2, 1e-24) under rsqrt
    xn_bf = (x32 * jax.lax.rsqrt(jnp.maximum(ssq, 1e-24))).astype(jnp.bfloat16)

    w32 = W.astype(jnp.float32)
    w_norm = jnp.sqrt(jnp.sum(w32 * w32, axis=0, keepdims=True))
    wn = w32 / jnp.maximum(w_norm, 1e-12)
    wn_scaled_bf = (wn * float(scale)).astype(jnp.bfloat16)        # (D, C)

    # Target logit per example, from the SAME bf16-quantized operands the MXU
    # sees (gather is O(N*D) here instead of O(N*C) work inside the kernel).
    w_cols = jnp.take(wn_scaled_bf, label.astype(jnp.int32), axis=1)   # (D, N)
    tgt = jnp.sum(xn_bf.astype(jnp.float32) * w_cols.T.astype(jnp.float32),
                  axis=1)                                              # (N,)

    # ---- Tiling ------------------------------------------------------------
    # Shrink TN to cover the whole batch in one tile when the batch is modest:
    # W is then streamed from HBM exactly once.  (On v7x megacore a single
    # batch tile idles one TC, but avoids paying W bandwidth twice.)
    tn = min(block_n, _round_up(n, 128))
    tc = min(block_c, _round_up(c, 8))
    n_pad = _round_up(n, tn)
    c_pad = _round_up(c, tc)

    x_t = jnp.pad(xn_bf, ((0, n_pad - n), (0, 0))).T                # (D, N_pad)
    wn_t = jnp.pad(wn_scaled_bf.T, ((0, c_pad - c), (0, 0)))        # (C_pad, D)

    grid = (n_pad // tn, c_pad // tc)

    lse = pl.pallas_call(
        functools.partial(_lse_kernel, n_classes=c, block_c=tc),
        out_shape=jax.ShapeDtypeStruct((1, n_pad), jnp.float32),
        grid_spec=pltpu.PrefetchScalarGridSpec(
            num_scalar_prefetch=0,
            grid=grid,
            in_specs=[
                pl.BlockSpec((d, tn), lambda i, j: (0, i)),   # x tile, reused over j
                pl.BlockSpec((tc, d), lambda i, j: (j, 0)),   # W tile (reduction stream)
            ],
            out_specs=pl.BlockSpec((1, tn), lambda i, j: (0, i)),   # lane-dense
            scratch_shapes=[
                pltpu.VMEM((1, tn), jnp.float32),    # running max
                pltpu.VMEM((1, tn), jnp.float32),    # running sum(exp)
            ],
        ),
        compiler_params=pltpu.CompilerParams(
            dimension_semantics=("parallel", "arbitrary"),
            vmem_limit_bytes=32 * 1024 * 1024),
    )(x_t, wn_t)

    # per-example CE = logsumexp(scaled logits) - scaled target logit.
    # NOTE: padded batch lanes are sliced off here, BEFORE the OHEM top_k, so
    # the garbage lse of zero-padded lanes never reaches the selection.
    per_example = lse[0, :n] - tgt

    # OHEM selection (tiny O(N) glue): mean of the top n_pick losses.
    n_pick = max(int(n * thresh), 1)
    top, _ = jax.lax.top_k(per_example, n_pick)
    return jnp.mean(top)


def _reference_loss(x, label, W, thresh, scale):
    """Pure-JAX f32 reference of the PyTorch forward."""
    x = x.astype(jnp.float32)
    W = W.astype(jnp.float32)
    xn = x / jnp.maximum(jnp.sqrt(jnp.sum(x * x, axis=1, keepdims=True)), 1e-12)
    wn = W / jnp.maximum(jnp.sqrt(jnp.sum(W * W, axis=0, keepdims=True)), 1e-12)
    logits = scale * (xn @ wn)
    lse = jax.scipy.special.logsumexp(logits, axis=1)
    tgt = jnp.take_along_axis(logits, label[:, None].astype(jnp.int32), axis=1)[:, 0]
    per = lse - tgt
    n_pick = max(int(x.shape[0] * thresh), 1)
    return jnp.mean(jax.lax.top_k(per, n_pick)[0])


def _init_weight(key, in_feats, n_classes):
    # torch.nn.init.xavier_normal_(W, gain=1): std = sqrt(2 / (fan_in + fan_out))
    std = (2.0 / (in_feats + n_classes)) ** 0.5
    return std * jax.random.normal(key, (in_feats, n_classes), dtype=jnp.float32)


if __name__ == "__main__":
    key = jax.random.PRNGKey(0)
    k_x, k_w, k_lbl = jax.random.split(key, 3)

    N, IN_FEATS, N_CLASSES = 8, 32, 16
    THRESH, SCALE = 0.7, 14.0

    x = jax.random.normal(k_x, (N, IN_FEATS), dtype=jnp.float32)
    label = jax.random.randint(k_lbl, (N,), 0, N_CLASSES, dtype=jnp.int32)
    W = _init_weight(k_w, IN_FEATS, N_CLASSES)

    loss = ohem_sphere_loss(x, label, W, thresh=THRESH, scale=SCALE)
    ref = _reference_loss(x, label, W, THRESH, SCALE)
    jax.block_until_ready((loss, ref))

    assert loss.shape == () and bool(jnp.isfinite(loss))
    # bf16 MXU operands -> allow small deviation from the f32 reference.
    assert abs(float(loss) - float(ref)) < 0.1, (float(loss), float(ref))
    print("KERNEL_OK")
</pallas_src>

<mosaic_0001>
module attributes {stable_mosaic.version = 11 : i64} {
  func.func @_lse_kernel(%arg0: i32, %arg1: i32, %arg2: memref<32x128xbf16, #tpu.memory_space<vmem>>, %arg3: memref<16x32xbf16, #tpu.memory_space<vmem>>, %arg4: memref<1x128xf32, #tpu.memory_space<vmem>>, %arg5: memref<1x128xf32, #tpu.memory_space<vmem>>, %arg6: memref<1x128xf32, #tpu.memory_space<vmem>>) attributes {dimension_semantics = [#tpu.dimension_semantics<parallel>, #tpu.dimension_semantics<arbitrary>], iteration_bounds = array<i64: 1, 1>, scalar_prefetch = 0 : i64, scratch_operands = 2 : i64, tpu.core_type = #tpu.core_type<tc>, window_params = [{transform_indices = @transform_0, window_bounds = array<i64: 32, 128>}, {transform_indices = @transform_1, window_bounds = array<i64: 16, 32>}, {transform_indices = @transform_2, window_bounds = array<i64: 1, 128>}]} {
    %c0_i32 = arith.constant 0 : i32
    %0 = arith.cmpi eq, %arg1, %c0_i32 : i32
    %1 = arith.extui %0 : i1 to i32
    %c0_i32_0 = arith.constant 0 : i32
    %2 = arith.cmpi ne, %1, %c0_i32_0 : i32
    scf.if %2 {
      %cst_18 = arith.constant -1.000000e+30 : f32
      %26 = vector.broadcast %cst_18 : f32 to vector<1x128xf32>
      %c0_19 = arith.constant 0 : index
      %c0_20 = arith.constant 0 : index
      %27 = vector.load %arg5[%c0_19, %c0_20] : memref<1x128xf32, #tpu.memory_space<vmem>>, vector<1x128xf32>
      tpu.vector_store %arg5[%c0_19, %c0_20], %26 {strides = array<i32>} : memref<1x128xf32, #tpu.memory_space<vmem>>, vector<1x128xf32>,
      %cst_21 = arith.constant 0.000000e+00 : f32
      %28 = vector.broadcast %cst_21 : f32 to vector<1x128xf32>
      %c0_22 = arith.constant 0 : index
      %c0_23 = arith.constant 0 : index
      %29 = vector.load %arg6[%c0_22, %c0_23] : memref<1x128xf32, #tpu.memory_space<vmem>>, vector<1x128xf32>
      tpu.vector_store %arg6[%c0_22, %c0_23], %28 {strides = array<i32>} : memref<1x128xf32, #tpu.memory_space<vmem>>, vector<1x128xf32>,
    } else {
    }
    %c0 = arith.constant 0 : index
    %c0_1 = arith.constant 0 : index
    %3 = vector.load %arg3[%c0, %c0_1] : memref<16x32xbf16, #tpu.memory_space<vmem>>, vector<16x32xbf16>
    %c0_2 = arith.constant 0 : index
    %c0_3 = arith.constant 0 : index
    %4 = vector.load %arg2[%c0_2, %c0_3] : memref<32x128xbf16, #tpu.memory_space<vmem>>, vector<32x128xbf16>
    %cst = arith.constant dense<0.000000e+00> : vector<16x128xf32>
    %5 = tpu.matmul %3, %4, %cst {dimension_numbers = #tpu.dot_dimension_numbers<[1], [0], [0], [1], [0, 0, 1, 1], [], []>} : vector<16x32xbf16>, vector<32x128xbf16>, vector<16x128xf32> -> vector<16x128xf32>
    %cst_4 = arith.constant dense<0xFF800000> : vector<128xf32>
    %6 = vector.multi_reduction <maximumf>, %5, %cst_4 [0] : vector<16x128xf32> to vector<128xf32>
    %7 = vector.shape_cast %6 : vector<128xf32> to vector<1x128xf32>
    %c0_5 = arith.constant 0 : index
    %c0_6 = arith.constant 0 : index
    %8 = vector.load %arg5[%c0_5, %c0_6] : memref<1x128xf32, #tpu.memory_space<vmem>>, vector<1x128xf32>
    %9 = arith.maximumf %8, %7 : vector<1x128xf32>
    %c0_7 = arith.constant 0 : index
    %c0_8 = arith.constant 0 : index
    %10 = vector.load %arg5[%c0_7, %c0_8] : memref<1x128xf32, #tpu.memory_space<vmem>>, vector<1x128xf32>
    %11 = arith.subf %10, %9 : vector<1x128xf32>
    %12 = math.exp %11 : vector<1x128xf32>
    %13 = vector.broadcast %9 : vector<1x128xf32> to vector<16x128xf32>
    %14 = arith.subf %5, %13 : vector<16x128xf32>
    %15 = math.exp %14 : vector<16x128xf32>
    %c0_9 = arith.constant 0 : index
    %c0_10 = arith.constant 0 : index
    %16 = vector.load %arg6[%c0_9, %c0_10] : memref<1x128xf32, #tpu.memory_space<vmem>>, vector<1x128xf32>
    %17 = arith.mulf %12, %16 : vector<1x128xf32>
    %cst_11 = arith.constant dense<0.000000e+00> : vector<128xf32>
    %18 = vector.multi_reduction <add>, %15, %cst_11 [0] : vector<16x128xf32> to vector<128xf32>
    %19 = vector.shape_cast %18 : vector<128xf32> to vector<1x128xf32>
    %20 = arith.addf %17, %19 : vector<1x128xf32>
    %c0_12 = arith.constant 0 : index
    %c0_13 = arith.constant 0 : index
    %21 = vector.load %arg6[%c0_12, %c0_13] : memref<1x128xf32, #tpu.memory_space<vmem>>, vector<1x128xf32>
    tpu.vector_store %arg6[%c0_12, %c0_13], %20 {strides = array<i32>} : memref<1x128xf32, #tpu.memory_space<vmem>>, vector<1x128xf32>,
    %c0_14 = arith.constant 0 : index
    %c0_15 = arith.constant 0 : index
    %22 = vector.load %arg5[%c0_14, %c0_15] : memref<1x128xf32, #tpu.memory_space<vmem>>, vector<1x128xf32>
    tpu.vector_store %arg5[%c0_14, %c0_15], %9 {strides = array<i32>} : memref<1x128xf32, #tpu.memory_space<vmem>>, vector<1x128xf32>,
    %c0_i32_16 = arith.constant 0 : i32
    %23 = arith.cmpi eq, %arg1, %c0_i32_16 : i32
    %24 = arith.extui %23 : i1 to i32
    %c0_i32_17 = arith.constant 0 : i32
    %25 = arith.cmpi ne, %24, %c0_i32_17 : i32
    scf.if %25 {
      %c0_18 = arith.constant 0 : index
      %c0_19 = arith.constant 0 : index
      %26 = vector.load %arg5[%c0_18, %c0_19] : memref<1x128xf32, #tpu.memory_space<vmem>>, vector<1x128xf32>
      %c0_20 = arith.constant 0 : index
      %c0_21 = arith.constant 0 : index
      %27 = vector.load %arg6[%c0_20, %c0_21] : memref<1x128xf32, #tpu.memory_space<vmem>>, vector<1x128xf32>
      %28 = math.log %27 : vector<1x128xf32>
      %29 = arith.addf %26, %28 : vector<1x128xf32>
      %c0_22 = arith.constant 0 : index
      %c0_23 = arith.constant 0 : index
      %30 = vector.load %arg4[%c0_22, %c0_23] : memref<1x128xf32, #tpu.memory_space<vmem>>, vector<1x128xf32>
      tpu.vector_store %arg4[%c0_22, %c0_23], %29 {strides = array<i32>} : memref<1x128xf32, #tpu.memory_space<vmem>>, vector<1x128xf32>,
    } else {
    }
    return
  }
  func.func @transform_0(%arg0: i32, %arg1: i32) -> (i32, i32) {
    %c0_i32 = arith.constant 0 : i32
    %c0_i32_0 = arith.constant 0 : i32
    return %c0_i32, %arg0 : i32, i32
  }
  func.func @transform_1(%arg0: i32, %arg1: i32) -> (i32, i32) {
    %c0_i32 = arith.constant 0 : i32
    %c0_i32_0 = arith.constant 0 : i32
    return %arg1, %c0_i32 : i32, i32
  }
  func.func @transform_2(%arg0: i32, %arg1: i32) -> (i32, i32) {
    %c0_i32 = arith.constant 0 : i32
    %c0_i32_0 = arith.constant 0 : i32
    return %c0_i32, %arg0 : i32, i32
  }
}

</mosaic_0001>

<llo_original>
// kernel: tpu_custom_call.1
$region0: #{tpu_custom_call.1}
  #allocation0 [shape = 'u32[]', space=smem, size = 0x4, offset = 0x4, fixed_abs, tag = 'smem constant byte address 0x4 - core index']
  #allocation1 [shape = 'u32[144,128]{1,0:T(1,128)}', space=vmem, size = 0x12000, scoped, tag = 'internal scratch']
  #allocation2 [shape = 'f32[1,128]{1,0:T(1,128)}', space=vmem, size = 0x200, scoped, tag = 'scratch operand']
  #allocation3 [shape = 'f32[1,128]{1,0:T(1,128)}', space=vmem, size = 0x200, scoped, tag = 'scratch operand']
  %s0 = inlined_call_operand.hbm [shape: bf16[32,128], index: 0, kind: input, shape index: {}]
  %s1 = inlined_call_operand.hbm [shape: bf16[16,32], index: 1, kind: input, shape index: {}]
  %s2 = inlined_call_operand.hbm [shape: f32[1,128], index: 2, kind: output, shape index: {}]
  %s3 = sld [smem:[#allocation0]]
  $region34: #{tpu_custom_call.1} parent=0
    _
  %s5 = ssub.s32 1, %s3
  %s6 = scalar_select 0, %s5, %s3
  $region1: #{tpu_custom_call.1} parent=0
    #allocation4 [shape = 'u8[8192]{0}', space=vmem, size = 0x2000, scoped, tag = 'input window, operand 0, single buffered']
    #allocation5 [shape = 's32[1]{0}', space=sflag, size = 0x4, scoped, tag = 'scoped memory for tpu_custom_call.1']
    #allocation6 [shape = 's32[1]{0}', space=sflag, size = 0x4, scoped, tag = 'scoped memory for tpu_custom_call.1']
    #allocation7 [shape = 'u8[4096]{0}', space=vmem, size = 0x1000, scoped, tag = 'input window, operand 1, single buffered']
    #allocation8 [shape = 's32[1]{0}', space=sflag, size = 0x4, scoped, tag = 'scoped memory for tpu_custom_call.1']
    #allocation9 [shape = 'u8[512]{0}', space=vmem, size = 0x400, scoped, tag = 'output window, operand 0, single buffered']
    %7 = vsyncpa [#allocation5], 0
    %8 = vsyncpa [#allocation8], 0
    %9 = vsyncpa [#allocation6], 0
    // Predicated region
    $region2: #{tpu_custom_call.1} parent=1 // pred_check
      _
    $region3: #{tpu_custom_call.1} parent=1 // pred_check_branch
      %11 = sbr.rel (0) target = $region5
    $region4: #{tpu_custom_call.1} parent=1 // pred_region
      %s13 = ssub.s32 256, 256
      %14 = vsyncadd [#allocation5], %s13
      %s15 = sshll.u32 [#allocation4], 4
      %s16 = int_to_ptr.vmem [resolvable:$true] %s15
      %21 = dma.hbm_to_vmem [thread:$0]  %s0, 256, %s16, [#allocation5], 64, 64, 4
    $region5: #{tpu_custom_call.1} parent=1 // pred_fallthru
      _
    // Predicated region
    $region6: #{tpu_custom_call.1} parent=1 // pred_check
      _
    $region7: #{tpu_custom_call.1} parent=1 // pred_check_branch
      %23 = sbr.rel (0) target = $region9
    $region8: #{tpu_custom_call.1} parent=1 // pred_region
      %s25 = ssub.s32 128, 128
      %26 = vsyncadd [#allocation8], %s25
      %s27 = sshll.u32 [#allocation7], 4
      %s28 = int_to_ptr.vmem [resolvable:$true] %s27
      %33 = dma.hbm_to_vmem [thread:$0]  %s1, 128, %s28, [#allocation8], 64, 64, 4
    $region9: #{tpu_custom_call.1} parent=1 // pred_fallthru
      _
    // Predicated region
    $region10: #{tpu_custom_call.1} parent=1 // pred_check
      _
    $region11: #{tpu_custom_call.1} parent=1 // pred_check_branch
      %35 = sbr.rel (0) target = $region13
    $region12: #{tpu_custom_call.1} parent=1 // pred_region
      %36 = dma.done [#allocation5], 256
    $region13: #{tpu_custom_call.1} parent=1 // pred_fallthru
      _
    // Predicated region
    $region14: #{tpu_custom_call.1} parent=1 // pred_check
      _
    $region15: #{tpu_custom_call.1} parent=1 // pred_check_branch
      %38 = sbr.rel (0) target = $region17
    $region16: #{tpu_custom_call.1} parent=1 // pred_region
      %39 = dma.done [#allocation8], 128
    $region17: #{tpu_custom_call.1} parent=1 // pred_fallthru
      _
    %p41 = scmp.eq.s32.totalorder 0, 0
    // Predicated region
    $region18: #{tpu_custom_call.1} parent=1 // pred_check
      %p42 = pneg %p41
    $region19: #{tpu_custom_call.1} parent=1 // pred_check_branch
      %44 = sbr.rel (%p42) target = $region21
    $region20: #{tpu_custom_call.1} parent=1 // pred_region
      %45 = vst [vmem:[#allocation2] sm:$0x1] -1e+30
      %46 = vst [vmem:[#allocation3] sm:$0x1] 0.0
    $region21: #{tpu_custom_call.1} parent=1 // pred_fallthru
      _
    %v47 = vld [vmem:[#allocation7] sm:$0xf]
    %v48 = vld [vmem:[#allocation7 + $0x4] sm:$0xf]
    %v49 = vld [vmem:[#allocation4] sm:$0xf]
    %v50 = vld [vmem:[#allocation4 + $0x4] sm:$0xf]
    %v51 = vld [vmem:[#allocation4 + $0x8] sm:$0xf]
    %v52 = vld [vmem:[#allocation4 + $0xc] sm:$0xf]
    %v55 = vunpack.c.l.b16 %v47
    %v56 = vunpack.c.l.b16 %v48
    %v57 = vpack.c.b16 %v56, %v55
    %v62 = vunpack.c.l.b16 %v49
    %v63 = vunpack.c.l.b16 %v50
    %v64 = vunpack.c.l.b16 %v51
    %v65 = vunpack.c.l.b16 %v52
    %v66 = vpack.c.b16 %v63, %v62
    %v67 = vpack.c.b16 %v65, %v64
    %vm70 = vcmask 261120
    %v72 = vsel %vm70, %v57, 0
    %74 = vmatprep.subr.bf16.mxu0 0
    %75 = vmatpush1.bf16.msra.mxu0 %v66
    %76 = vmatprep.subr.bf16.mxu0 0
    %77 = vmatpush1.bf16.msra.mxu0 %v67
    %78 = vmatprep.subr.bf16.mxu0 0
    %79 = vmatpush1.bf16.msra.mxu0 0
    %80 = vmatprep.subr.bf16.mxu0 0
    %81 = vmatpush1.bf16.msra.mxu0 0
    %82 = vmatprep.subr.bf16.mxu0 0
    %83 = vmatpush1.bf16.msra.mxu0 0
    %84 = vmatprep.subr.bf16.mxu0 0
    %85 = vmatpush1.bf16.msra.mxu0 0
    %86 = vmatprep.subr.bf16.mxu0 0
    %87 = vmatpush1.bf16.msra.mxu0 0
    %88 = vmatprep.subr.bf16.mxu0 0
    %89 = vmatpush1.bf16.msra.mxu0 0
    %90 = vmatprep.subr.bf16.mxu0 0
    %91 = vmatpush1.bf16.msra.mxu0 0
    %92 = vmatprep.subr.bf16.mxu0 0
    %93 = vmatpush1.bf16.msra.mxu0 0
    %94 = vmatprep.subr.bf16.mxu0 0
    %95 = vmatpush1.bf16.msra.mxu0 0
    %96 = vmatprep.subr.bf16.mxu0 0
    %97 = vmatpush1.bf16.msra.mxu0 0
    %98 = vmatprep.subr.bf16.mxu0 0
    %99 = vmatpush1.bf16.msra.mxu0 0
    %100 = vmatprep.subr.bf16.mxu0 0
    %101 = vmatpush1.bf16.msra.mxu0 0
    %102 = vmatprep.subr.bf16.mxu0 0
    %103 = vmatpush1.bf16.msra.mxu0 0
    %104 = vmatprep.subr.bf16.mxu0 0
    %105 = vmatpush1.bf16.msra.mxu0 0
    %106 = vmatprep.mubr.bf16.mxu0 0
    %107 = vmatmul.mubr.bf16.gmra.mrb[0].mxu0 %v72
    %v108 = vpop.f32.mrb[0].mxu0
    %v109 = vadd.f32 0.0, %v108
    %v110 = vpop.f32.mrb[0].mxu0
    %v111 = vpop.f32.mrb[0].mxu0
    %v112 = vadd.f32 0.0, %v111
    %v113 = vpop.f32.mrb[0].mxu0
    %114 = vdwg.mxu0
    %v115 = vmax.f32 %v109, %v112
    %v116 = vrot.slane %v115, 4
    %v117 = vmax.f32 %v115, %v116
    %v118 = vrot.slane %v117, 2
    %v119 = vmax.f32 %v117, %v118
    %v120 = vrot.slane %v119, 1
    %v121 = vmax.f32 %v119, %v120
    %v122 = vld [vmem:[#allocation2] sm:$0x1]
    %v123 = vmax.f32 %v122, %v121
    %v124 = vsub.f32 %v122, %v123
    %v125 = vmul.f32 %v124, 1.442695
    %v126 = vpow.pop %v125
    %v128 = vlaneseq
    %v129 = vshrl.u32 %v128, 7
    %v130 = vsub.s32 0, %v129
    %v131 = vrot.slane %v123, %v130
    %v133 = vsub.f32 %v109, %v131
    %v134 = vsub.f32 %v112, %v131
    %v135 = vmul.f32 %v133, 1.442695
    %v136 = vpow.pop %v135
    %v137 = vmul.f32 %v134, 1.442695
    %v138 = vpow.pop %v137
    %v139 = vld [vmem:[#allocation3] sm:$0x1]
    %v140 = vmul.f32 %v126, %v139
    %v141 = vadd.f32 %v136, %v138
    %v142 = vrot.slane %v141, 4
    %v143 = vadd.f32 %v141, %v142
    %v144 = vrot.slane %v143, 2
    %v145 = vadd.f32 %v143, %v144
    %v146 = vrot.slane %v145, 1
    %v147 = vadd.f32 %v145, %v146
    %v148 = vadd.f32 %v140, %v147
    %149 = vst [vmem:[#allocation3] sm:$0x1] %v148
    %150 = vst [vmem:[#allocation2] sm:$0x1] %v123
    // Predicated region
    $region22: #{tpu_custom_call.1} parent=1 // pred_check
      %p151 = pneg %p41
    $region23: #{tpu_custom_call.1} parent=1 // pred_check_branch
      %153 = sbr.rel (%p151) target = $region25
    $region24: #{tpu_custom_call.1} parent=1 // pred_region
      %v154 = vld [vmem:[#allocation2] sm:$0x1]
      %v155 = vld [vmem:[#allocation3] sm:$0x1]
      %v156 = vlog2.pop %v155
      %v157 = vmul.f32 %v156, 0.6931472
      %v158 = vadd.f32 %v154, %v157
      %159 = vst [vmem:[#allocation9] sm:$0x1] %v158
    $region25: #{tpu_custom_call.1} parent=1 // pred_fallthru
      _
    // Predicated region
    $region26: #{tpu_custom_call.1} parent=1 // pred_check
      _
    $region27: #{tpu_custom_call.1} parent=1 // pred_check_branch
      %161 = sbr.rel (0) target = $region29
    $region28: #{tpu_custom_call.1} parent=1 // pred_region
      %s163 = ssub.s32 16, 16
      %164 = vsyncadd [#allocation6], %s163
      %s166 = sshll.u32 [#allocation9], 4
      %s167 = int_to_ptr.vmem [resolvable:$true] %s166
      %169 = dma.vmem_to_hbm [thread:$0]  %s167, 16, %s2, [#allocation6]
    $region29: #{tpu_custom_call.1} parent=1 // pred_fallthru
      _
    // Predicated region
    $region30: #{tpu_custom_call.1} parent=1 // pred_check
      _
    $region31: #{tpu_custom_call.1} parent=1 // pred_check_branch
      %171 = sbr.rel (0) target = $region33
    $region32: #{tpu_custom_call.1} parent=1 // pred_region
      %172 = dma.done [#allocation6], 16
    $region33: #{tpu_custom_call.1} parent=1 // pred_fallthru
      _
    %173 = vsyncpa [#allocation5], 1
    %174 = vsyncpa [#allocation8], 1
    %175 = vsyncpa [#allocation6], 1

</llo_original>
